<compile_context>
chip_gen: v5e
topology: v5e:2x2
jax: 0.10.0
libtpu: 0.0.40
codegen_flags: <defaults>
</compile_context>

<pallas_src>
import jax
import jax.numpy as jnp
import numpy as np
from jax.experimental import pallas as pl
from jax.experimental.pallas import tpu as pltpu


# -----------------------------------------------------------------------------
# Pallas kernel: diffeq forward + Hutchinson divergence (analytic VJP) fused.
# -----------------------------------------------------------------------------
def _odefunc_kernel(t_ref, y_ref, e_ref, nproj_ref,
                    w1y_ref, w1t_ref, w2_ref, w2t_ref, b2_ref,
                    dy_ref, negdiv_ref):
    f32 = jnp.float32
    t = t_ref[0, 0]                        # scalar time (SMEM, f32)
    y = y_ref[...]                         # (T, D)  bf16
    e = e_ref[...]                         # (T, D)  bf16  Hutchinson noise
    npb = nproj_ref[...]                   # (T, H)  f32   node_attr@W1n + b1
    w1y = w1y_ref[...]                     # (D, H)  bf16  (resident)
    w1t = w1t_ref[...]                     # (1, H)  f32   (resident)
    w2 = w2_ref[...]                       # (H, D)  bf16  (resident)
    w2t = w2t_ref[...]                     # (D, H)  bf16  pre-transposed W2^T
    b2 = b2_ref[...]                       # (1, D)  f32   (resident)

    # ---- forward: dy = tanh(y@W1y + npb + t*W1t) @ W2 + b2 ----
    pre = jnp.dot(y, w1y, preferred_element_type=f32) + npb + t * w1t
    h = jnp.tanh(pre)                                              # (T, H) f32, EUP
    dy = jnp.dot(h.astype(jnp.bfloat16), w2, preferred_element_type=f32) + b2
    dy_ref[...] = dy.astype(dy_ref.dtype)

    # ---- divergence: div_n = sum_h [(e@W2^T)*(1-h^2)]_{n,h} * (e@W1y)_{n,h} ----
    v = jnp.dot(e, w2t, preferred_element_type=f32)                # (T, H)
    u = v * (1.0 - h * h)                                          # tanh'
    ew1 = jnp.dot(e, w1y, preferred_element_type=f32)              # (T, H)
    prod = (u * ew1).astype(jnp.bfloat16)                          # (T, H)
    ones_h = jnp.ones((1, prod.shape[1]), dtype=jnp.bfloat16)
    # Lane-dense (1, T) per-node sums via an MXU "A @ B^T" reduction (no masked
    # (T,1) column store on the writeback path).
    div_row = jax.lax.dot_general(
        ones_h, prod,
        dimension_numbers=(((1,), (1,)), ((), ())),
        preferred_element_type=f32)                                # (1, T)
    negdiv_ref[...] = jnp.reshape(-div_row, negdiv_ref.shape)


# -----------------------------------------------------------------------------
# Wrapper: tiling, specs, generation-aware tile choice.
# -----------------------------------------------------------------------------
def _pick_tile_n(d, h):
    """Row-tile size in multiples of 128, sized from a per-generation VMEM budget."""
    try:
        kind = jax.devices()[0].device_kind.lower()
    except Exception:
        kind = ""
    vmem_bytes = (64 if "v7" in kind else 128) * (1 << 20)   # v7x: 64 MiB per TC
    # streamed bytes/row (double-buffered) + f32 intermediates held in VMEM/vregs
    per_row = 2 * (2 * d + 2 * d + 4 * h + 4 * d + 4) + 8 * 4 * h
    tile = (vmem_bytes // 8) // max(per_row, 1)              # leave generous headroom
    return int(max(128, min(2048, (tile // 128) * 128)))


def _prepare_kernel_params(p):
    return {
        "w1y": p["w1y"].astype(jnp.bfloat16),
        "w1t": p["w1t"].astype(jnp.float32),
        "w2":  p["w2"].astype(jnp.bfloat16),
        "w2T": jnp.transpose(p["w2"]).astype(jnp.bfloat16),  # built once, no per-call .T
        "b2":  p["b2"].astype(jnp.float32),
    }


def _run_pallas(t_scalar, y, e, n_projb, kp, tile_n=None):
    N, D = y.shape
    H = n_projb.shape[1]
    if tile_n is None:
        tile_n = _pick_tile_n(D, H)
    n_pad = ((N + tile_n - 1) // tile_n) * tile_n
    if n_pad != N:
        pad = ((0, n_pad - N), (0, 0))
        y = jnp.pad(y, pad)
        e = jnp.pad(e, pad)
        n_projb = jnp.pad(n_projb, pad)
    grid_n = n_pad // tile_n

    t_arr = jnp.asarray(t_scalar, jnp.float32).reshape(1, 1)
    y_bf = y.astype(jnp.bfloat16)
    e_bf = e.astype(jnp.bfloat16)
    n_projb = n_projb.astype(jnp.float32)

    row_d = pl.BlockSpec((tile_n, D), lambda i: (i, 0))
    row_h = pl.BlockSpec((tile_n, H), lambda i: (i, 0))
    const = lambda shape: pl.BlockSpec(shape, lambda i: (0, 0))   # stays VMEM-resident

    dy, negdiv = pl.pallas_call(
        _odefunc_kernel,
        out_shape=(jax.ShapeDtypeStruct((n_pad, D), jnp.float32),
                   jax.ShapeDtypeStruct((grid_n, 1, tile_n), jnp.float32)),
        grid_spec=pltpu.PrefetchScalarGridSpec(
            num_scalar_prefetch=0,
            grid=(grid_n,),
            in_specs=[
                pl.BlockSpec(memory_space=pltpu.MemorySpace.SMEM),  # t (1,1) scalar
                row_d,                      # y        bf16, streamed
                row_d,                      # e        bf16, streamed
                row_h,                      # n_projb  f32,  streamed
                const((D, H)),              # w1y      bf16, resident
                const((1, H)),              # w1t      f32,  resident
                const((H, D)),              # w2       bf16, resident
                const((D, H)),              # w2T      bf16, resident
                const((1, D)),              # b2       f32,  resident
            ],
            out_specs=(
                pl.BlockSpec((tile_n, D), lambda i: (i, 0)),        # dy
                pl.BlockSpec((1, 1, tile_n), lambda i: (i, 0, 0)),  # -div, lane-dense rows
            ),
        ),
        compiler_params=pltpu.CompilerParams(
            dimension_semantics=("parallel",)),                     # v7x megacore split
    )(t_arr, y_bf, e_bf, n_projb,
      kp["w1y"], kp["w1t"], kp["w2"], kp["w2T"], kp["b2"])

    negdiv = negdiv.reshape(n_pad, 1)
    return dy[:N], negdiv[:N]


# -----------------------------------------------------------------------------
# ODEfunc wrapper (mirrors the torch module's state handling).
# -----------------------------------------------------------------------------
class ODEfuncPallas:
    def __init__(self, params, tile_n=None):
        self.params = params                         # f32 master copy
        self.kparams = _prepare_kernel_params(params)
        self.tile_n = tile_n
        self._e = None
        self._n_projb = None
        self._num_evals = 0.0                        # register_buffer('_num_evals')
        self.edge_index = None

    def before_odeint(self, edge_index=None, e=None):
        self._e = e
        self._num_evals = 0.0
        self.edge_index = edge_index
        self._n_projb = None                         # node_attr projection cache

    def __call__(self, t, states):
        assert len(states) == 4
        y, _logp, node_attr, edge_attr = states
        self._num_evals += 1
        if self._e is None:
            # TODO(synk): torch draws fresh randn noise; fixed key keeps the demo deterministic.
            self._e = jax.random.normal(jax.random.PRNGKey(1234), y.shape, y.dtype)
        if self._n_projb is None:
            # node_attr is constant across odeint evaluations: precompute its hidden
            # contribution (+ b1) once and stream it instead of re-matmul'ing per eval.
            self._n_projb = (jnp.dot(node_attr, self.params["w1n"],
                                     precision=jax.lax.Precision.HIGHEST)
                             + self.params["b1"]).astype(jnp.float32)
        dy, negdiv = _run_pallas(t, y, self._e, self._n_projb, self.kparams,
                                 tile_n=self.tile_n)
        return (dy,
                negdiv,                              # == -divergence.unsqueeze(-1)
                jnp.zeros_like(node_attr),
                jnp.zeros_like(edge_attr))


# -----------------------------------------------------------------------------
# References.
# -----------------------------------------------------------------------------
def _bf(x):
    """Round-trip through bf16, exactly like the kernel's MXU operands."""
    return x.astype(jnp.bfloat16).astype(jnp.float32)


def _diffeq_f32(t, y, n, p):
    hi = jax.lax.Precision.HIGHEST
    t_col = jnp.full((y.shape[0], 1), t, jnp.float32)
    pre = (jnp.dot(y, p["w1y"], precision=hi) + jnp.dot(n, p["w1n"], precision=hi)
           + t_col * p["w1t"] + p["b1"])
    return jnp.dot(jnp.tanh(pre), p["w2"], precision=hi) + p["b2"]


def _reference_f32(t, y, n, e, p):
    """Pure-f32 autodiff reference (mirrors torch.autograd.grad semantics)."""
    dy, vjp_fn = jax.vjp(lambda yy: _diffeq_f32(t, yy, n, p), y)
    e_dzdx = vjp_fn(e)[0]
    return dy, -jnp.sum(e_dzdx * e, axis=-1, keepdims=True)


def _reference_matched(t, y, n, e, p):
    """Reference applying the kernel's exact bf16 operand rounding (tight check)."""
    hi = jax.lax.Precision.HIGHEST
    n_projb = jnp.dot(n, p["w1n"], precision=hi) + p["b1"]
    pre = jnp.dot(_bf(y), _bf(p["w1y"]), precision=hi) + n_projb + t * p["w1t"]
    h = jnp.tanh(pre)
    dy = jnp.dot(_bf(h), _bf(p["w2"]), precision=hi) + p["b2"]
    v = jnp.dot(_bf(e), _bf(p["w2"].T), precision=hi)
    u = v * (1.0 - h * h)
    ew1 = jnp.dot(_bf(e), _bf(p["w1y"]), precision=hi)
    div = jnp.sum(_bf(u * ew1), axis=-1, keepdims=True)
    return dy, -div


# -----------------------------------------------------------------------------
if __name__ == "__main__":
    # Small synthetic shapes: N nodes, D-dim state y, Dn-dim node_attr,
    # E edges with De-dim edge_attr, H hidden units in the synthetic diffeq.
    N, D, Dn, H = 512, 4, 4, 32
    E, De = 1024, 3
    TILE_N = 128          # small tile so the demo exercises a 4-step pipelined grid

    key = jax.random.PRNGKey(0)
    ks = jax.random.split(key, 10)

    params = {
        "w1y": 0.3 * jax.random.normal(ks[0], (D, H), jnp.float32),
        "w1n": 0.3 * jax.random.normal(ks[1], (Dn, H), jnp.float32),
        "w1t": 0.3 * jax.random.normal(ks[2], (1, H), jnp.float32),
        "b1":  0.1 * jax.random.normal(ks[3], (1, H), jnp.float32),
        "w2":  0.3 * jax.random.normal(ks[4], (H, D), jnp.float32),
        "b2":  0.1 * jax.random.normal(ks[5], (1, D), jnp.float32),
    }

    y = jax.random.normal(ks[6], (N, D), jnp.float32)
    logp = jnp.zeros((N, 1), jnp.float32)
    node_attr = jax.random.normal(ks[7], (N, Dn), jnp.float32)
    edge_attr = jax.random.normal(ks[8], (E, De), jnp.float32)
    e_noise = jax.random.normal(ks[9], (N, D), jnp.float32)
    t = 0.37

    odefunc = ODEfuncPallas(params, tile_n=TILE_N)
    odefunc.before_odeint(edge_index=None, e=e_noise)

    dy, negdiv, zn, ze = odefunc(t, (y, logp, node_attr, edge_attr))
    jax.block_until_ready((dy, negdiv, zn, ze))

    # 1) Tight check vs a reference with the kernel's exact bf16 operand rounding
    #    (validates the fused forward + analytic-VJP math).
    dy_m, negdiv_m = _reference_matched(t, y, node_attr, e_noise, params)
    np.testing.assert_allclose(np.asarray(dy), np.asarray(dy_m), rtol=5e-3, atol=5e-3)
    np.testing.assert_allclose(np.asarray(negdiv), np.asarray(negdiv_m), rtol=5e-3, atol=5e-3)

    # 2) Loose sanity check vs the pure-f32 autodiff reference (tolerances sized for
    #    the bf16-MXU vs f32 drift; precision itself is validated by check 1).
    dy_r, negdiv_r = _reference_f32(t, y, node_attr, e_noise, params)
    np.testing.assert_allclose(np.asarray(dy), np.asarray(dy_r), rtol=5e-2, atol=6e-2)
    np.testing.assert_allclose(np.asarray(negdiv), np.asarray(negdiv_r), rtol=5e-2, atol=1.5e-1)

    assert dy.shape == (N, D) and negdiv.shape == (N, 1)
    assert zn.shape == node_attr.shape and ze.shape == edge_attr.shape
    assert float(jnp.abs(zn).sum()) == 0.0 and float(jnp.abs(ze).sum()) == 0.0
    assert odefunc._num_evals == 1.0

    print("KERNEL_OK")
</pallas_src>

<mosaic_0001>
module attributes {stable_mosaic.version = 11 : i64} {
  func.func @_odefunc_kernel(%arg0: i32, %arg1: memref<1x1xf32, #tpu.memory_space<smem>>, %arg2: memref<128x4xbf16, #tpu.memory_space<vmem>>, %arg3: memref<128x4xbf16, #tpu.memory_space<vmem>>, %arg4: memref<128x32xf32, #tpu.memory_space<vmem>>, %arg5: memref<4x32xbf16, #tpu.memory_space<vmem>>, %arg6: memref<1x32xf32, #tpu.memory_space<vmem>>, %arg7: memref<32x4xbf16, #tpu.memory_space<vmem>>, %arg8: memref<4x32xbf16, #tpu.memory_space<vmem>>, %arg9: memref<1x4xf32, #tpu.memory_space<vmem>>, %arg10: memref<128x4xf32, #tpu.memory_space<vmem>>, %arg11: memref<1x1x128xf32, #tpu.memory_space<vmem>>) attributes {dimension_semantics = [#tpu.dimension_semantics<parallel>], iteration_bounds = array<i64: 4>, scalar_prefetch = 0 : i64, scratch_operands = 0 : i64, tpu.core_type = #tpu.core_type<tc>, window_params = [{transform_indices = @transform_0, window_bounds = array<i64: 1, 1>}, {transform_indices = @transform_1, window_bounds = array<i64: 128, 4>}, {transform_indices = @transform_2, window_bounds = array<i64: 128, 4>}, {transform_indices = @transform_3, window_bounds = array<i64: 128, 32>}, {pipeline_mode = #tpu.pipeline_mode<synchronous>, transform_indices = @transform_4, window_bounds = array<i64: 4, 32>}, {pipeline_mode = #tpu.pipeline_mode<synchronous>, transform_indices = @transform_5, window_bounds = array<i64: 1, 32>}, {pipeline_mode = #tpu.pipeline_mode<synchronous>, transform_indices = @transform_6, window_bounds = array<i64: 32, 4>}, {pipeline_mode = #tpu.pipeline_mode<synchronous>, transform_indices = @transform_7, window_bounds = array<i64: 4, 32>}, {pipeline_mode = #tpu.pipeline_mode<synchronous>, transform_indices = @transform_8, window_bounds = array<i64: 1, 4>}, {transform_indices = @transform_9, window_bounds = array<i64: 128, 4>}, {transform_indices = @transform_10, window_bounds = array<i64: 1, 1, 128>}]} {
    %c0 = arith.constant 0 : index
    %c0_0 = arith.constant 0 : index
    %0 = memref.load %arg1[%c0, %c0_0] : memref<1x1xf32, #tpu.memory_space<smem>>
    %c0_1 = arith.constant 0 : index
    %c0_2 = arith.constant 0 : index
    %1 = vector.load %arg2[%c0_1, %c0_2] : memref<128x4xbf16, #tpu.memory_space<vmem>>, vector<128x4xbf16>
    %c0_3 = arith.constant 0 : index
    %c0_4 = arith.constant 0 : index
    %2 = vector.load %arg3[%c0_3, %c0_4] : memref<128x4xbf16, #tpu.memory_space<vmem>>, vector<128x4xbf16>
    %c0_5 = arith.constant 0 : index
    %c0_6 = arith.constant 0 : index
    %3 = vector.load %arg4[%c0_5, %c0_6] : memref<128x32xf32, #tpu.memory_space<vmem>>, vector<128x32xf32>
    %c0_7 = arith.constant 0 : index
    %c0_8 = arith.constant 0 : index
    %4 = vector.load %arg5[%c0_7, %c0_8] : memref<4x32xbf16, #tpu.memory_space<vmem>>, vector<4x32xbf16>
    %c0_9 = arith.constant 0 : index
    %c0_10 = arith.constant 0 : index
    %5 = vector.load %arg6[%c0_9, %c0_10] : memref<1x32xf32, #tpu.memory_space<vmem>>, vector<1x32xf32>
    %c0_11 = arith.constant 0 : index
    %c0_12 = arith.constant 0 : index
    %6 = vector.load %arg7[%c0_11, %c0_12] : memref<32x4xbf16, #tpu.memory_space<vmem>>, vector<32x4xbf16>
    %c0_13 = arith.constant 0 : index
    %c0_14 = arith.constant 0 : index
    %7 = vector.load %arg8[%c0_13, %c0_14] : memref<4x32xbf16, #tpu.memory_space<vmem>>, vector<4x32xbf16>
    %c0_15 = arith.constant 0 : index
    %c0_16 = arith.constant 0 : index
    %8 = vector.load %arg9[%c0_15, %c0_16] : memref<1x4xf32, #tpu.memory_space<vmem>>, vector<1x4xf32>
    %cst = arith.constant dense<0.000000e+00> : vector<128x32xf32>
    %9 = tpu.matmul %1, %4, %cst {dimension_numbers = #tpu.dot_dimension_numbers<[1], [0], [0], [1], [0, 0, 1, 1], [], []>} : vector<128x4xbf16>, vector<4x32xbf16>, vector<128x32xf32> -> vector<128x32xf32>
    %10 = arith.addf %9, %3 : vector<128x32xf32>
    %11 = vector.broadcast %0 : f32 to vector<1x32xf32>
    %12 = arith.mulf %11, %5 : vector<1x32xf32>
    %13 = vector.broadcast %12 : vector<1x32xf32> to vector<128x32xf32>
    %14 = arith.addf %10, %13 : vector<128x32xf32>
    %15 = math.tanh %14 : vector<128x32xf32>
    %16 = arith.truncf %15 : vector<128x32xf32> to vector<128x32xbf16>
    %cst_17 = arith.constant dense<0.000000e+00> : vector<128x4xf32>
    %17 = tpu.matmul %16, %6, %cst_17 {dimension_numbers = #tpu.dot_dimension_numbers<[1], [0], [0], [1], [0, 0, 1, 1], [], []>} : vector<128x32xbf16>, vector<32x4xbf16>, vector<128x4xf32> -> vector<128x4xf32>
    %18 = vector.broadcast %8 : vector<1x4xf32> to vector<128x4xf32>
    %19 = arith.addf %17, %18 : vector<128x4xf32>
    %c0_18 = arith.constant 0 : index
    %c0_19 = arith.constant 0 : index
    %20 = vector.load %arg10[%c0_18, %c0_19] : memref<128x4xf32, #tpu.memory_space<vmem>>, vector<128x4xf32>
    tpu.vector_store %arg10[%c0_18, %c0_19], %19 {strides = array<i32>} : memref<128x4xf32, #tpu.memory_space<vmem>>, vector<128x4xf32>,
    %cst_20 = arith.constant dense<0.000000e+00> : vector<128x32xf32>
    %21 = tpu.matmul %2, %7, %cst_20 {dimension_numbers = #tpu.dot_dimension_numbers<[1], [0], [0], [1], [0, 0, 1, 1], [], []>} : vector<128x4xbf16>, vector<4x32xbf16>, vector<128x32xf32> -> vector<128x32xf32>
    %22 = arith.mulf %15, %15 : vector<128x32xf32>
    %cst_21 = arith.constant 1.000000e+00 : f32
    %23 = vector.broadcast %cst_21 : f32 to vector<128x32xf32>
    %24 = arith.subf %23, %22 : vector<128x32xf32>
    %25 = arith.mulf %21, %24 : vector<128x32xf32>
    %cst_22 = arith.constant dense<0.000000e+00> : vector<128x32xf32>
    %26 = tpu.matmul %2, %4, %cst_22 {dimension_numbers = #tpu.dot_dimension_numbers<[1], [0], [0], [1], [0, 0, 1, 1], [], []>} : vector<128x4xbf16>, vector<4x32xbf16>, vector<128x32xf32> -> vector<128x32xf32>
    %27 = arith.mulf %25, %26 : vector<128x32xf32>
    %28 = arith.truncf %27 : vector<128x32xf32> to vector<128x32xbf16>
    %cst_23 = arith.constant 1.000000e+00 : bf16
    %29 = vector.broadcast %cst_23 : bf16 to vector<1x32xbf16>
    %cst_24 = arith.constant dense<0.000000e+00> : vector<1x128xf32>
    %30 = tpu.matmul %29, %28, %cst_24 {dimension_numbers = #tpu.dot_dimension_numbers<[1], [1], [0], [0], [0, 0, 1, 0], [], []>} : vector<1x32xbf16>, vector<128x32xbf16>, vector<1x128xf32> -> vector<1x128xf32>
    %cst_25 = arith.constant 0.000000e+00 : f32
    %31 = vector.broadcast %cst_25 : f32 to vector<1x128xf32>
    %32 = arith.subf %31, %30 : vector<1x128xf32>
    %33 = vector.shape_cast %32 : vector<1x128xf32> to vector<1x1x128xf32>
    %c0_26 = arith.constant 0 : index
    %c0_27 = arith.constant 0 : index
    %c0_28 = arith.constant 0 : index
    %34 = vector.load %arg11[%c0_26, %c0_27, %c0_28] : memref<1x1x128xf32, #tpu.memory_space<vmem>>, vector<1x1x128xf32>
    tpu.vector_store %arg11[%c0_26, %c0_27, %c0_28], %33 {strides = array<i32>} : memref<1x1x128xf32, #tpu.memory_space<vmem>>, vector<1x1x128xf32>,
    return
  }
  func.func @transform_0(%arg0: i32) -> (i32, i32) {
    %c0_i32 = arith.constant 0 : i32
    %c0_i32_0 = arith.constant 0 : i32
    %c0_i32_1 = arith.constant 0 : i32
    return %c0_i32, %c0_i32_0 : i32, i32
  }
  func.func @transform_1(%arg0: i32) -> (i32, i32) {
    %c0_i32 = arith.constant 0 : i32
    %c0_i32_0 = arith.constant 0 : i32
    return %arg0, %c0_i32 : i32, i32
  }
  func.func @transform_2(%arg0: i32) -> (i32, i32) {
    %c0_i32 = arith.constant 0 : i32
    %c0_i32_0 = arith.constant 0 : i32
    return %arg0, %c0_i32 : i32, i32
  }
  func.func @transform_3(%arg0: i32) -> (i32, i32) {
    %c0_i32 = arith.constant 0 : i32
    %c0_i32_0 = arith.constant 0 : i32
    return %arg0, %c0_i32 : i32, i32
  }
  func.func @transform_4(%arg0: i32) -> (i32, i32) {
    %c0_i32 = arith.constant 0 : i32
    %c0_i32_0 = arith.constant 0 : i32
    %c0_i32_1 = arith.constant 0 : i32
    return %c0_i32, %c0_i32_0 : i32, i32
  }
  func.func @transform_5(%arg0: i32) -> (i32, i32) {
    %c0_i32 = arith.constant 0 : i32
    %c0_i32_0 = arith.constant 0 : i32
    %c0_i32_1 = arith.constant 0 : i32
    return %c0_i32, %c0_i32_0 : i32, i32
  }
  func.func @transform_6(%arg0: i32) -> (i32, i32) {
    %c0_i32 = arith.constant 0 : i32
    %c0_i32_0 = arith.constant 0 : i32
    %c0_i32_1 = arith.constant 0 : i32
    return %c0_i32, %c0_i32_0 : i32, i32
  }
  func.func @transform_7(%arg0: i32) -> (i32, i32) {
    %c0_i32 = arith.constant 0 : i32
    %c0_i32_0 = arith.constant 0 : i32
    %c0_i32_1 = arith.constant 0 : i32
    return %c0_i32, %c0_i32_0 : i32, i32
  }
  func.func @transform_8(%arg0: i32) -> (i32, i32) {
    %c0_i32 = arith.constant 0 : i32
    %c0_i32_0 = arith.constant 0 : i32
    %c0_i32_1 = arith.constant 0 : i32
    return %c0_i32, %c0_i32_0 : i32, i32
  }
  func.func @transform_9(%arg0: i32) -> (i32, i32) {
    %c0_i32 = arith.constant 0 : i32
    %c0_i32_0 = arith.constant 0 : i32
    return %arg0, %c0_i32 : i32, i32
  }
  func.func @transform_10(%arg0: i32) -> (i32, i32, i32) {
    %c0_i32 = arith.constant 0 : i32
    %c0_i32_0 = arith.constant 0 : i32
    %c0_i32_1 = arith.constant 0 : i32
    return %arg0, %c0_i32, %c0_i32_0 : i32, i32, i32
  }
}

</mosaic_0001>

<llo_original>
// kernel: tpu_custom_call.1
$region0: #{tpu_custom_call.1}
  #allocation0 [shape = 'u32[]', space=smem, size = 0x4, offset = 0x4, fixed_abs, tag = 'smem constant byte address 0x4 - core index']
  #allocation1 [shape = 'u32[72,128]{1,0:T(1,128)}', space=vmem, size = 0x9000, scoped, tag = 'internal scratch']
  #allocation2 [shape = 'f32[1,1]{1,0:T(1,128)S(6)}', space=smem, size = 0x200, scoped, tag = 'scoped memory for tpu_custom_call.1']
  %s0 = inlined_call_operand.<no memory space> [shape: f32[1,1], index: 0, kind: input, shape index: {}]
  %s1 = inlined_call_operand.vmem [shape: bf16[512,4], index: 1, kind: input, shape index: {}]
  %s2 = inlined_call_operand.vmem [shape: bf16[512,4], index: 2, kind: input, shape index: {}]
  %s3 = inlined_call_operand.vmem [shape: f32[512,32], index: 3, kind: input, shape index: {}]
  %s4 = inlined_call_operand.vmem [shape: bf16[4,32], index: 4, kind: input, shape index: {}]
  %s5 = inlined_call_operand.vmem [shape: f32[1,32], index: 5, kind: input, shape index: {}]
  %s6 = inlined_call_operand.vmem [shape: bf16[32,4], index: 6, kind: input, shape index: {}]
  %s7 = inlined_call_operand.vmem [shape: bf16[4,32], index: 7, kind: input, shape index: {}]
  %s8 = inlined_call_operand.vmem [shape: f32[1,4], index: 8, kind: input, shape index: {}]
  %s9 = inlined_call_operand.vmem [shape: f32[512,4], index: 9, kind: output, shape index: {0}]
  %s10 = inlined_call_operand.hbm [shape: f32[4,1,128], index: 10, kind: output, shape index: {1}]
  %11 = xla_tuple %s9, %s10
  %s12 = sld [smem:[#allocation0]]
  $region77: #{tpu_custom_call.1} parent=0
    _
  %s14 = ssub.s32 1, %s12
  %s15 = scalar_select 0, %s14, %s12
  %16 = sst [smem:[#allocation2]] %s0
  $region1: #{tpu_custom_call.1} parent=0
    #allocation3 [shape = 'u8[1024]{0}', space=vmem, size = 0x400, scoped, tag = 'output window, operand 1']
    #allocation4 [shape = 's32[2]{0}', space=sflag, size = 0x8, scoped, tag = 'scoped memory for tpu_custom_call.1']
    %17 = vsyncpa [#allocation4], 0
    %s18 = scalar_lea.sflag [#allocation4], 1
    %19 = vsyncpa %s18, 0
    loop: start=0, step=1, limit=6
    $region2: #{tpu_custom_call.1} parent=1 // loop_pre_header
      _
    $region3: #{tpu_custom_call.1} parent=1 // loop_header
      %s21 = sphi 0, %s25
      %p22 = scmp.ge.s32.totalorder %s21, 6
      %s29 = sphi 0, %s29
      %s31 = sphi 0, %s29
      %s32 = sphi 0, %s31
      %s46 = sphi 0, %s32
      %s52 = sphi 0, %s54
      %s55 = sphi 0, %s52
      %s56 = sphi 0, %s55
      %s72 = sphi 0, %s56
      %s78 = sphi 0, %s80
      %s81 = sphi 0, %s78
      %s82 = sphi 0, %s81
      %s98 = sphi 0, %s82
      %s104 = sphi 0, %s106
      %s107 = sphi 0, %s104
      %s108 = sphi 0, %s107
      %s124 = sphi 0, %s108
      %s128 = sphi 0, %s128
      %s130 = sphi 0, %s128
      %s131 = sphi 0, %s130
      %s145 = sphi 0, %s131
      %s149 = sphi 0, %s149
      %s151 = sphi 0, %s149
      %s152 = sphi 0, %s151
      %s166 = sphi 0, %s152
      %s170 = sphi 0, %s170
      %s172 = sphi 0, %s170
      %s173 = sphi 0, %s172
      %s187 = sphi 0, %s173
      %s191 = sphi 0, %s191
      %s193 = sphi 0, %s191
      %s194 = sphi 0, %s193
      %s208 = sphi 0, %s194
      %s212 = sphi 0, %s212
      %s214 = sphi 0, %s212
      %s215 = sphi 0, %s214
      %s229 = sphi 0, %s215
      %s235 = sphi 0, %s237
      %s238 = sphi 0, %s235
      %s239 = sphi 0, %s238
      %s255 = sphi 0, %s239
      %s261 = sphi 0, %s263
      %s264 = sphi 0, %s261
      %s265 = sphi 0, %s264
      %s281 = sphi 0, %s265
    $region4: #{tpu_custom_call.1} parent=1 // loop_header_branch
      %24 = sbr.rel (%p22) target = $region8
    $region5: #{tpu_custom_call.1} parent=1 // loop_body
      %s26 = ssub.s32 %s21, 1
      %s27 = ssub.s32 %s21, 2
      %s28 = sadd.s32 %s21, 1
      %s30 = sadd.s32 %s29, 1
      %p33 = scmp.eq.s32.totalorder %s21, 3
      %p34 = scmp.ne.s32.totalorder %s29, %s31
      %p35 = scmp.eq.s32.totalorder %s21, 0
      %p36 = por %p34, %p35
      %p37 = scmp.ne.s32.totalorder %s29, %s31
      %p38 = scmp.eq.s32.totalorder %s26, 3
      %p39 = por %p37, %p38
      %p40 = scmp.ne.s32.totalorder %s31, %s32
      %p41 = scmp.eq.s32.totalorder %s26, 0
      %p42 = por %p40, %p41
      %p43 = scmp.ne.s32.totalorder %s31, %s32
      %p44 = scmp.eq.s32.totalorder %s27, 3
      %p45 = por %p43, %p44
      %p47 = scmp.ne.s32.totalorder %s32, %s46
      %p48 = scmp.eq.s32.totalorder %s27, 0
      %p49 = por %p47, %p48
      %s50 = ssub.s32 %s21, %s28
      %p51 = scmp.eq.s32.totalorder %s50, 0
      %s53 = sadd.s32 %s52, 1
      %s54 = scalar_select %p51, %s52, %s53
      %p57 = pneg %p51
      %p58 = scmp.eq.s32.totalorder %s21, 3
      %p59 = por %p57, %p58
      %p60 = scmp.ne.s32.totalorder %s52, %s55
      %p61 = scmp.eq.s32.totalorder %s21, 0
      %p62 = por %p60, %p61
      %p63 = scmp.ne.s32.totalorder %s52, %s55
      %p64 = scmp.eq.s32.totalorder %s26, 3
      %p65 = por %p63, %p64
      %p66 = scmp.ne.s32.totalorder %s55, %s56
      %p67 = scmp.eq.s32.totalorder %s26, 0
      %p68 = por %p66, %p67
      %p69 = scmp.ne.s32.totalorder %s55, %s56
      %p70 = scmp.eq.s32.totalorder %s27, 3
      %p71 = por %p69, %p70
      %p73 = scmp.ne.s32.totalorder %s56, %s72
      %p74 = scmp.eq.s32.totalorder %s27, 0
      %p75 = por %p73, %p74
      %s76 = ssub.s32 %s21, %s28
      %p77 = scmp.eq.s32.totalorder %s76, 0
      %s79 = sadd.s32 %s78, 1
      %s80 = scalar_select %p77, %s78, %s79
      %p83 = pneg %p77
      %p84 = scmp.eq.s32.totalorder %s21, 3
      %p85 = por %p83, %p84
      %p86 = scmp.ne.s32.totalorder %s78, %s81
      %p87 = scmp.eq.s32.totalorder %s21, 0
      %p88 = por %p86, %p87
      %p89 = scmp.ne.s32.totalorder %s78, %s81
      %p90 = scmp.eq.s32.totalorder %s26, 3
      %p91 = por %p89, %p90
      %p92 = scmp.ne.s32.totalorder %s81, %s82
      %p93 = scmp.eq.s32.totalorder %s26, 0
      %p94 = por %p92, %p93
      %p95 = scmp.ne.s32.totalorder %s81, %s82
      %p96 = scmp.eq.s32.totalorder %s27, 3
      %p97 = por %p95, %p96
      %p99 = scmp.ne.s32.totalorder %s82, %s98
      %p100 = scmp.eq.s32.totalorder %s27, 0
      %p101 = por %p99, %p100
      %s102 = ssub.s32 %s21, %s28
      %p103 = scmp.eq.s32.totalorder %s102, 0
      %s105 = sadd.s32 %s104, 1
      %s106 = scalar_select %p103, %s104, %s105
      %p109 = pneg %p103
      %p110 = scmp.eq.s32.totalorder %s21, 3
      %p111 = por %p109, %p110
      %p112 = scmp.ne.s32.totalorder %s104, %s107
      %p113 = scmp.eq.s32.totalorder %s21, 0
      %p114 = por %p112, %p113
      %p115 = scmp.ne.s32.totalorder %s104, %s107
      %p116 = scmp.eq.s32.totalorder %s26, 3
      %p117 = por %p115, %p116
      %p118 = scmp.ne.s32.totalorder %s107, %s108
      %p119 = scmp.eq.s32.totalorder %s26, 0
      %p120 = por %p118, %p119
      %p121 = scmp.ne.s32.totalorder %s107, %s108
      %p122 = scmp.eq.s32.totalorder %s27, 3
      %p123 = por %p121, %p122
      %p125 = scmp.ne.s32.totalorder %s108, %s124
      %p126 = scmp.eq.s32.totalorder %s27, 0
      %p127 = por %p125, %p126
      %s129 = sadd.s32 %s128, 1
      %p132 = scmp.eq.s32.totalorder %s21, 3
      %p133 = scmp.ne.s32.totalorder %s128, %s130
      %p134 = scmp.eq.s32.totalorder %s21, 0
      %p135 = por %p133, %p134
      %p136 = scmp.ne.s32.totalorder %s128, %s130
      %p137 = scmp.eq.s32.totalorder %s26, 3
      %p138 = por %p136, %p137
      %p139 = scmp.ne.s32.totalorder %s130, %s131
      %p140 = scmp.eq.s32.totalorder %s26, 0
      %p141 = por %p139, %p140
      %p142 = scmp.ne.s32.totalorder %s130, %s131
      %p143 = scmp.eq.s32.totalorder %s27, 3
      %p144 = por %p142, %p143
      %p146 = scmp.ne.s32.totalorder %s131, %s145
      %p147 = scmp.eq.s32.totalorder %s27, 0
      %p148 = por %p146, %p147
      %s150 = sadd.s32 %s149, 1
      %p153 = scmp.eq.s32.totalorder %s21, 3
      %p154 = scmp.ne.s32.totalorder %s149, %s151
      %p155 = scmp.eq.s32.totalorder %s21, 0
      %p156 = por %p154, %p155
      %p157 = scmp.ne.s32.totalorder %s149, %s151
      %p158 = scmp.eq.s32.totalorder %s26, 3
      %p159 = por %p157, %p158
      %p160 = scmp.ne.s32.totalorder %s151, %s152
      %p161 = scmp.eq.s32.totalorder %s26, 0
      %p162 = por %p160, %p161
      %p163 = scmp.ne.s32.totalorder %s151, %s152
      %p164 = scmp.eq.s32.totalorder %s27, 3
      %p165 = por %p163, %p164
      %p167 = scmp.ne.s32.totalorder %s152, %s166
      %p168 = scmp.eq.s32.totalorder %s27, 0
      %p169 = por %p167, %p168
      %s171 = sadd.s32 %s170, 1
      %p174 = scmp.eq.s32.totalorder %s21, 3
      %p175 = scmp.ne.s32.totalorder %s170, %s172
      %p176 = scmp.eq.s32.totalorder %s21, 0
      %p177 = por %p175, %p176
      %p178 = scmp.ne.s32.totalorder %s170, %s172
      %p179 = scmp.eq.s32.totalorder %s26, 3
      %p180 = por %p178, %p179
      %p181 = scmp.ne.s32.totalorder %s172, %s173
      %p182 = scmp.eq.s32.totalorder %s26, 0
      %p183 = por %p181, %p182
      %p184 = scmp.ne.s32.totalorder %s172, %s173
      %p185 = scmp.eq.s32.totalorder %s27, 3
      %p186 = por %p184, %p185
      %p188 = scmp.ne.s32.totalorder %s173, %s187
      %p189 = scmp.eq.s32.totalorder %s27, 0
      %p190 = por %p188, %p189
      %s192 = sadd.s32 %s191, 1
      %p195 = scmp.eq.s32.totalorder %s21, 3
      %p196 = scmp.ne.s32.totalorder %s191, %s193
      %p197 = scmp.eq.s32.totalorder %s21, 0
      %p198 = por %p196, %p197
      %p199 = scmp.ne.s32.totalorder %s191, %s193
      %p200 = scmp.eq.s32.totalorder %s26, 3
      %p201 = por %p199, %p200
      %p202 = scmp.ne.s32.totalorder %s193, %s194
      %p203 = scmp.eq.s32.totalorder %s26, 0
      %p204 = por %p202, %p203
      %p205 = scmp.ne.s32.totalorder %s193, %s194
      %p206 = scmp.eq.s32.totalorder %s27, 3
      %p207 = por %p205, %p206
      %p209 = scmp.ne.s32.totalorder %s194, %s208
      %p210 = scmp.eq.s32.totalorder %s27, 0
      %p211 = por %p209, %p210
      %s213 = sadd.s32 %s212, 1
      %p216 = scmp.eq.s32.totalorder %s21, 3
      %p217 = scmp.ne.s32.totalorder %s212, %s214
      %p218 = scmp.eq.s32.totalorder %s21, 0
      %p219 = por %p217, %p218
      %p220 = scmp.ne.s32.totalorder %s212, %s214
      %p221 = scmp.eq.s32.totalorder %s26, 3
      %p222 = por %p220, %p221
      %p223 = scmp.ne.s32.totalorder %s214, %s215
      %p224 = scmp.eq.s32.totalorder %s26, 0
      %p225 = por %p223, %p224
      %p226 = scmp.ne.s32.totalorder %s214, %s215
      %p227 = scmp.eq.s32.totalorder %s27, 3
      %p228 = por %p226, %p227
      %p230 = scmp.ne.s32.totalorder %s215, %s229
      %p231 = scmp.eq.s32.totalorder %s27, 0
      %p232 = por %p230, %p231
      %s233 = ssub.s32 %s21, %s28
      %p234 = scmp.eq.s32.totalorder %s233, 0
      %s236 = sadd.s32 %s235, 1
      %s237 = scalar_select %p234, %s235, %s236
      %p240 = pneg %p234
      %p241 = scmp.eq.s32.totalorder %s21, 3
      %p242 = por %p240, %p241
      %p243 = scmp.ne.s32.totalorder %s235, %s238
      %p244 = scmp.eq.s32.totalorder %s21, 0
      %p245 = por %p243, %p244
      %p246 = scmp.ne.s32.totalorder %s235, %s238
      %p247 = scmp.eq.s32.totalorder %s26, 3
      %p248 = por %p246, %p247
      %p249 = scmp.ne.s32.totalorder %s238, %s239
      %p250 = scmp.eq.s32.totalorder %s26, 0
      %p251 = por %p249, %p250
      %p252 = scmp.ne.s32.totalorder %s238, %s239
      %p253 = scmp.eq.s32.totalorder %s27, 3
      %p254 = por %p252, %p253
      %p256 = scmp.ne.s32.totalorder %s239, %s255
      %p257 = scmp.eq.s32.totalorder %s27, 0
      %p258 = por %p256, %p257
      %s259 = ssub.s32 %s21, %s28
      %p260 = scmp.eq.s32.totalorder %s259, 0
      %s262 = sadd.s32 %s261, 1
      %s263 = scalar_select %p260, %s261, %s262
      %p266 = pneg %p260
      %p267 = scmp.eq.s32.totalorder %s21, 3
      %p268 = por %p266, %p267
      %p269 = scmp.ne.s32.totalorder %s261, %s264
      %p270 = scmp.eq.s32.totalorder %s21, 0
      %p271 = por %p269, %p270
      %p272 = scmp.ne.s32.totalorder %s261, %s264
      %p273 = scmp.eq.s32.totalorder %s26, 3
      %p274 = por %p272, %p273
      %p275 = scmp.ne.s32.totalorder %s264, %s265
      %p276 = scmp.eq.s32.totalorder %s26, 0
      %p277 = por %p275, %p276
      %p278 = scmp.ne.s32.totalorder %s264, %s265
      %p279 = scmp.eq.s32.totalorder %s27, 3
      %p280 = por %p278, %p279
      %p282 = scmp.ne.s32.totalorder %s265, %s281
      %p283 = scmp.eq.s32.totalorder %s27, 0
      %p284 = por %p282, %p283
      %p285 = scmp.le.s32.totalorder 1, %s21
      %p286 = scmp.lt.s32.totalorder %s21, 5
      %p287 = pnand %p285, %p286
      %p288 = pneg %p287
      // Predicated region
      $region9: #{tpu_custom_call.1} parent=5 // pred_check
        _
      $region10: #{tpu_custom_call.1} parent=5 // pred_check_branch
        %290 = sbr.rel (%p287) target = $region12
      $region11: #{tpu_custom_call.1} parent=5 // pred_region
        %s291 = ssub.s32 %s21, 1
        // Predicated region
        $region13: #{tpu_custom_call.1} parent=11 // pred_check
          %p292 = pneg %p42
        $region14: #{tpu_custom_call.1} parent=11 // pred_check_branch
          %294 = sbr.rel (%p292) target = $region16
        $region15: #{tpu_custom_call.1} parent=11 // pred_region
          _
        $region16: #{tpu_custom_call.1} parent=11 // pred_fallthru
          _
        // Predicated region
        $region17: #{tpu_custom_call.1} parent=11 // pred_check
          %p295 = pneg %p141
        $region18: #{tpu_custom_call.1} parent=11 // pred_check_branch
          %297 = sbr.rel (%p295) target = $region20
        $region19: #{tpu_custom_call.1} parent=11 // pred_region
          _
        $region20: #{tpu_custom_call.1} parent=11 // pred_fallthru
          _
        // Predicated region
        $region21: #{tpu_custom_call.1} parent=11 // pred_check
          %p298 = pneg %p162
        $region22: #{tpu_custom_call.1} parent=11 // pred_check_branch
          %300 = sbr.rel (%p298) target = $region24
        $region23: #{tpu_custom_call.1} parent=11 // pred_region
          _
        $region24: #{tpu_custom_call.1} parent=11 // pred_fallthru
          _
        // Predicated region
        $region25: #{tpu_custom_call.1} parent=11 // pred_check
          %p301 = pneg %p183
        $region26: #{tpu_custom_call.1} parent=11 // pred_check_branch
          %303 = sbr.rel (%p301) target = $region28
        $region27: #{tpu_custom_call.1} parent=11 // pred_region
          _
        $region28: #{tpu_custom_call.1} parent=11 // pred_fallthru
          _
        // Predicated region
        $region29: #{tpu_custom_call.1} parent=11 // pred_check
          %p304 = pneg %p204
        $region30: #{tpu_custom_call.1} parent=11 // pred_check_branch
          %306 = sbr.rel (%p304) target = $region32
        $region31: #{tpu_custom_call.1} parent=11 // pred_region
          _
        $region32: #{tpu_custom_call.1} parent=11 // pred_fallthru
          _
        // Predicated region
        $region33: #{tpu_custom_call.1} parent=11 // pred_check
          %p307 = pneg %p225
        $region34: #{tpu_custom_call.1} parent=11 // pred_check_branch
          %309 = sbr.rel (%p307) target = $region36
        $region35: #{tpu_custom_call.1} parent=11 // pred_region
          _
        $region36: #{tpu_custom_call.1} parent=11 // pred_fallthru
          _
      $region12: #{tpu_custom_call.1} parent=5 // pred_fallthru
        _
      %p310 = scmp.lt.s32.totalorder %s21, 4
      // Predicated region
      $region37: #{tpu_custom_call.1} parent=5 // pred_check
        %p311 = pneg %p310
      $region38: #{tpu_custom_call.1} parent=5 // pred_check_branch
        %313 = sbr.rel (%p311) target = $region40
      $region39: #{tpu_custom_call.1} parent=5 // pred_region
        // Predicated region
        $region41: #{tpu_custom_call.1} parent=39 // pred_check
          %p314 = pneg %p62
        $region42: #{tpu_custom_call.1} parent=39 // pred_check_branch
          %316 = sbr.rel (%p314) target = $region44
        $region43: #{tpu_custom_call.1} parent=39 // pred_region
          %s317 = smul.u32 16, %s21
          %p318 = scmp.lt.s32.totalorder %s317, 63
          %s319 = scalar_select %p318, %s317, 63
          %s320 = smul.addr %s319, 4
          %s321 = scalar_lea.vmem %s1, %s320
          %s322 = smul.u32 16, %s21
        $region44: #{tpu_custom_call.1} parent=39 // pred_fallthru
          _
        // Predicated region
        $region45: #{tpu_custom_call.1} parent=39 // pred_check
          %p323 = pneg %p88
        $region46: #{tpu_custom_call.1} parent=39 // pred_check_branch
          %325 = sbr.rel (%p323) target = $region48
        $region47: #{tpu_custom_call.1} parent=39 // pred_region
          %s326 = smul.u32 16, %s21
          %p327 = scmp.lt.s32.totalorder %s326, 63
          %s328 = scalar_select %p327, %s326, 63
          %s329 = smul.addr %s328, 4
          %s330 = scalar_lea.vmem %s2, %s329
          %s331 = smul.u32 16, %s21
        $region48: #{tpu_custom_call.1} parent=39 // pred_fallthru
          _
        // Predicated region
        $region49: #{tpu_custom_call.1} parent=39 // pred_check
          %p332 = pneg %p114
        $region50: #{tpu_custom_call.1} parent=39 // pred_check_branch
          %334 = sbr.rel (%p332) target = $region52
        $region51: #{tpu_custom_call.1} parent=39 // pred_region
          %s335 = smul.u32 16, %s21
          %p336 = scmp.lt.s32.totalorder %s335, 63
          %s337 = scalar_select %p336, %s335, 63
          %s338 = smul.addr %s337, 8
          %s339 = scalar_lea.vmem %s3, %s338
          %s340 = smul.u32 16, %s21
        $region52: #{tpu_custom_call.1} parent=39 // pred_fallthru
          _
      $region40: #{tpu_custom_call.1} parent=5 // pred_fallthru
        _
      %p341 = scmp.le.s32.totalorder 1, %s21
      %p342 = scmp.lt.s32.totalorder %s21, 5
      %p343 = pnand %p341, %p342
      %p344 = pneg %p343
      // Predicated region
      $region53: #{tpu_custom_call.1} parent=5 // pred_check
        _
      $region54: #{tpu_custom_call.1} parent=5 // pred_check_branch
        %346 = sbr.rel (%p343) target = $region56
      $region55: #{tpu_custom_call.1} parent=5 // pred_region
        %s347 = ssub.s32 %s21, 1
        %p348 = pneg %p42
        %p349 = pneg %p39
        %s350 = smul.u32 16, %s26
        %p351 = scmp.lt.s32.totalorder %s350, 63
        %s352 = scalar_select %p351, %s350, 63
        %s353 = smul.addr %s352, 4
        %s354 = scalar_lea.vmem %s1, %s353
        %p355 = pneg %p68
        %p356 = pneg %p65
        %s357 = smul.u32 16, %s26
        %p358 = scmp.lt.s32.totalorder %s357, 63
        %s359 = scalar_select %p358, %s357, 63
        %s360 = smul.addr %s359, 4
        %s361 = scalar_lea.vmem %s2, %s360
        %p362 = pneg %p94
        %p363 = pneg %p91
        %s364 = smul.u32 16, %s26
        %p365 = scmp.lt.s32.totalorder %s364, 63
        %s366 = scalar_select %p365, %s364, 63
        %s367 = smul.addr %s366, 8
        %s368 = scalar_lea.vmem %s3, %s367
        %p369 = pneg %p120
        %p370 = pneg %p117
        %p371 = pneg %p141
        %p372 = pneg %p138
        %p373 = pneg %p162
        %p374 = pneg %p159
        %p375 = pneg %p183
        %p376 = pneg %p180
        %p377 = pneg %p204
        %p378 = pneg %p201
        %p379 = pneg %p225
        %p380 = pneg %p222
        %p381 = pneg %p251
        %p382 = pneg %p248
        %s383 = smul.u32 16, %s26
        %p384 = scmp.lt.s32.totalorder %s383, 63
        %s385 = scalar_select %p384, %s383, 63
        %s386 = smul.addr %s385, 8
        %s387 = scalar_lea.vmem %s9, %s386
        %p388 = pneg %p277
        %p389 = pneg %p274
        %s390 = sand.u32 %s264, 1
        %s391 = scalar_lea.sflag [#allocation4], %s390
        %s392 = sand.u32 %s264, 1
        %s393 = scalar_lea.vmem [#allocation3], %s392
        %s394 = smul.u32 16, %s26
        %p395 = scmp.lt.s32.totalorder %s394, 63
        %s396 = scalar_select %p395, %s394, 63
        %s397 = smul.addr %s396, 4
        %s398 = scalar_lea.vmem %s1, %s397
        %s399 = smul.u32 16, %s26
        %s400 = smul.u32 16, %s26
        %p401 = scmp.lt.s32.totalorder %s400, 63
        %s402 = scalar_select %p401, %s400, 63
        %s403 = smul.addr %s402, 4
        %s404 = scalar_lea.vmem %s2, %s403
        %s405 = smul.u32 16, %s26
        %s406 = smul.u32 16, %s26
        %p407 = scmp.lt.s32.totalorder %s406, 63
        %s408 = scalar_select %p407, %s406, 63
        %s409 = smul.addr %s408, 8
        %s410 = scalar_lea.vmem %s3, %s409
        %s411 = smul.u32 16, %s26
        %s412 = smul.u32 16, %s26
        %p413 = scmp.lt.s32.totalorder %s412, 63
        %s414 = scalar_select %p413, %s412, 63
        %s415 = smul.addr %s414, 8
        %s416 = scalar_lea.vmem %s9, %s415
        %s417 = smul.u32 16, %s26
        %s420 = sld [smem:[#allocation2]]
        %v421 = vld [vmem:[%s398] sm:$0xf]
        %v422 = vld [vmem:[%s398 + $0x4] sm:$0xf]
        %v423 = vld [vmem:[%s398 + $0x8] sm:$0xf]
        %v424 = vld [vmem:[%s398 + $0xc] sm:$0xf]
        %v425 = vld [vmem:[%s398 + $0x10] sm:$0xf]
        %v426 = vld [vmem:[%s398 + $0x14] sm:$0xf]
        %v427 = vld [vmem:[%s398 + $0x18] sm:$0xf]
        %v428 = vld [vmem:[%s398 + $0x1c] sm:$0xf]
        %v429 = vld [vmem:[%s398 + $0x20] sm:$0xf]
        %v430 = vld [vmem:[%s398 + $0x24] sm:$0xf]
        %v431 = vld [vmem:[%s398 + $0x28] sm:$0xf]
        %v432 = vld [vmem:[%s398 + $0x2c] sm:$0xf]
        %v433 = vld [vmem:[%s398 + $0x30] sm:$0xf]
        %v434 = vld [vmem:[%s398 + $0x34] sm:$0xf]
        %v435 = vld [vmem:[%s398 + $0x38] sm:$0xf]
        %v436 = vld [vmem:[%s398 + $0x3c] sm:$0xf]
        %v437 = vld [vmem:[%s404] sm:$0xf]
        %v438 = vld [vmem:[%s404 + $0x4] sm:$0xf]
        %v439 = vld [vmem:[%s404 + $0x8] sm:$0xf]
        %v440 = vld [vmem:[%s404 + $0xc] sm:$0xf]
        %v441 = vld [vmem:[%s404 + $0x10] sm:$0xf]
        %v442 = vld [vmem:[%s404 + $0x14] sm:$0xf]
        %v443 = vld [vmem:[%s404 + $0x18] sm:$0xf]
        %v444 = vld [vmem:[%s404 + $0x1c] sm:$0xf]
        %v445 = vld [vmem:[%s404 + $0x20] sm:$0xf]
        %v446 = vld [vmem:[%s404 + $0x24] sm:$0xf]
        %v447 = vld [vmem:[%s404 + $0x28] sm:$0xf]
        %v448 = vld [vmem:[%s404 + $0x2c] sm:$0xf]
        %v449 = vld [vmem:[%s404 + $0x30] sm:$0xf]
        %v450 = vld [vmem:[%s404 + $0x34] sm:$0xf]
        %v451 = vld [vmem:[%s404 + $0x38] sm:$0xf]
        %v452 = vld [vmem:[%s404 + $0x3c] sm:$0xf]
        %v453 = vld [vmem:[%s410] sm:$0xff]
        %v454 = vld [vmem:[%s410 + $0x8] sm:$0xff]
        %v455 = vld [vmem:[%s410 + $0x10] sm:$0xff]
        %v456 = vld [vmem:[%s410 + $0x18] sm:$0xff]
        %v457 = vld [vmem:[%s410 + $0x20] sm:$0xff]
        %v458 = vld [vmem:[%s410 + $0x28] sm:$0xff]
        %v459 = vld [vmem:[%s410 + $0x30] sm:$0xff]
        %v460 = vld [vmem:[%s410 + $0x38] sm:$0xff]
        %v461 = vld [vmem:[%s410 + $0x40] sm:$0xff]
        %v462 = vld [vmem:[%s410 + $0x48] sm:$0xff]
        %v463 = vld [vmem:[%s410 + $0x50] sm:$0xff]
        %v464 = vld [vmem:[%s410 + $0x58] sm:$0xff]
        %v465 = vld [vmem:[%s410 + $0x60] sm:$0xff]
        %v466 = vld [vmem:[%s410 + $0x68] sm:$0xff]
        %v467 = vld [vmem:[%s410 + $0x70] sm:$0xff]
        %v468 = vld [vmem:[%s410 + $0x78] sm:$0xff]
        %v469 = vld [vmem:[%s4] sm:$0x3]
        %v470 = vld [vmem:[%s5] sm:$0x1]
        %v471 = vld [vmem:[%s6] sm:$0xf]
        %v472 = vld [vmem:[%s6 + $0x4] sm:$0xf]
        %v473 = vld [vmem:[%s6 + $0x8] sm:$0xf]
        %v474 = vld [vmem:[%s6 + $0xc] sm:$0xf]
        %v475 = vld [vmem:[%s7] sm:$0x3]
        %v476 = vld [vmem:[%s8] sm:$0x1]
        %v493 = vunpack.c.l.b16 %v421
        %v494 = vunpack.c.l.b16 %v422
        %v495 = vunpack.c.l.b16 %v423
        %v496 = vunpack.c.l.b16 %v424
        %v497 = vunpack.c.l.b16 %v425
        %v498 = vunpack.c.l.b16 %v426
        %v499 = vunpack.c.l.b16 %v427
        %v500 = vunpack.c.l.b16 %v428
        %v501 = vunpack.c.l.b16 %v429
        %v502 = vunpack.c.l.b16 %v430
        %v503 = vunpack.c.l.b16 %v431
        %v504 = vunpack.c.l.b16 %v432
        %v505 = vunpack.c.l.b16 %v433
        %v506 = vunpack.c.l.b16 %v434
        %v507 = vunpack.c.l.b16 %v435
        %v508 = vunpack.c.l.b16 %v436
        %v509 = vpack.c.b16 %v494, %v493
        %v510 = vpack.c.b16 %v496, %v495
        %v511 = vpack.c.b16 %v498, %v497
        %v512 = vpack.c.b16 %v500, %v499
        %v513 = vpack.c.b16 %v502, %v501
        %v514 = vpack.c.b16 %v504, %v503
        %v515 = vpack.c.b16 %v506, %v505
        %v516 = vpack.c.b16 %v508, %v507
        %vm517 = vcmask 31744
        %v519 = vsel %vm517, %v509, 0
        %v522 = vsel %vm517, %v510, 0
        %v525 = vsel %vm517, %v511, 0
        %v528 = vsel %vm517, %v512, 0
        %v531 = vsel %vm517, %v513, 0
        %v534 = vsel %vm517, %v514, 0
        %v537 = vsel %vm517, %v515, 0
        %v540 = vsel %vm517, %v516, 0
        %vm542 = vcmask 1041408
        %v544 = vsel %vm542, %v469, 0
        %546 = vmatpush.bf16.msra.mxu0 0
        %547 = vmatpush.bf16.msra.mxu0 0
        %548 = vmatpush.bf16.msra.mxu0 0
        %549 = vmatpush.bf16.msra.mxu0 0
        %550 = vmatpush.bf16.msra.mxu0 0
        %551 = vmatpush.bf16.msra.mxu0 0
        %552 = vmatpush.bf16.msra.mxu0 0
        %553 = vmatpush.bf16.msra.mxu0 %v544
        %554 = vmatmul.bf16.gmra.mxu0 %v519
        %v555 = vpop.f32.mrf.mxu0
        %v556 = vadd.f32 %v453, %v555
        %v557 = vpop.f32.mrf.mxu0
        %v558 = vadd.f32 %v454, %v557
        %559 = vmatmul.bf16.gmra.mxu0 %v522
        %v560 = vpop.f32.mrf.mxu0
        %v561 = vadd.f32 %v455, %v560
        %v562 = vpop.f32.mrf.mxu0
        %v563 = vadd.f32 %v456, %v562
        %564 = vmatmul.bf16.gmra.mxu0 %v525
        %v565 = vpop.f32.mrf.mxu0
        %v566 = vadd.f32 %v457, %v565
        %v567 = vpop.f32.mrf.mxu0
        %v568 = vadd.f32 %v458, %v567
        %569 = vmatmul.bf16.gmra.mxu0 %v528
        %v570 = vpop.f32.mrf.mxu0
        %v571 = vadd.f32 %v459, %v570
        %v572 = vpop.f32.mrf.mxu0
        %v573 = vadd.f32 %v460, %v572
        %574 = vmatmul.bf16.gmra.mxu0 %v531
        %v575 = vpop.f32.mrf.mxu0
        %v576 = vadd.f32 %v461, %v575
        %v577 = vpop.f32.mrf.mxu0
        %v578 = vadd.f32 %v462, %v577
        %579 = vmatmul.bf16.gmra.mxu0 %v534
        %v580 = vpop.f32.mrf.mxu0
        %v581 = vadd.f32 %v463, %v580
        %v582 = vpop.f32.mrf.mxu0
        %v583 = vadd.f32 %v464, %v582
        %584 = vmatmul.bf16.gmra.mxu0 %v537
        %v585 = vpop.f32.mrf.mxu0
        %v586 = vadd.f32 %v465, %v585
        %v587 = vpop.f32.mrf.mxu0
        %v588 = vadd.f32 %v466, %v587
        %589 = vmatmul.bf16.gmra.mxu0 %v540
        %v590 = vpop.f32.mrf.mxu0
        %v591 = vadd.f32 %v467, %v590
        %v592 = vpop.f32.mrf.mxu0
        %v593 = vadd.f32 %v468, %v592
        %594 = vdwg.mxu0
        %v595 = vstv %s420
        %v596 = vmul.f32 %v595, %v470
        %v598 = vperm.slane %v596, 0
        %v600 = vadd.f32 %v556, %v598
        %v601 = vadd.f32 %v558, %v598
        %v602 = vadd.f32 %v561, %v598
        %v603 = vadd.f32 %v563, %v598
        %v604 = vadd.f32 %v566, %v598
        %v605 = vadd.f32 %v568, %v598
        %v606 = vadd.f32 %v571, %v598
        %v607 = vadd.f32 %v573, %v598
        %v608 = vadd.f32 %v576, %v598
        %v609 = vadd.f32 %v578, %v598
        %v610 = vadd.f32 %v581, %v598
        %v611 = vadd.f32 %v583, %v598
        %v612 = vadd.f32 %v586, %v598
        %v613 = vadd.f32 %v588, %v598
        %v614 = vadd.f32 %v591, %v598
        %v615 = vadd.f32 %v593, %v598
        %v616 = vtanh.pop %v600
        %v617 = vtanh.pop %v601
        %v618 = vtanh.pop %v602
        %v619 = vtanh.pop %v603
        %v620 = vtanh.pop %v604
        %v621 = vtanh.pop %v605
        %v622 = vtanh.pop %v606
        %v623 = vtanh.pop %v607
        %v624 = vtanh.pop %v608
        %v625 = vtanh.pop %v609
        %v626 = vtanh.pop %v610
        %v627 = vtanh.pop %v611
        %v628 = vtanh.pop %v612
        %v629 = vtanh.pop %v613
        %v630 = vtanh.pop %v614
        %v631 = vtanh.pop %v615
        %v632 = vpack.c.bf16 %v617, %v616
        %v633 = vpack.c.bf16 %v619, %v618
        %v634 = vpack.c.bf16 %v621, %v620
        %v635 = vpack.c.bf16 %v623, %v622
        %v636 = vpack.c.bf16 %v625, %v624
        %v637 = vpack.c.bf16 %v627, %v626
        %v638 = vpack.c.bf16 %v629, %v628
        %v639 = vpack.c.bf16 %v631, %v630
        %v641 = vperm.slane %v476, 0
        %v647 = vunpack.c.l.b16 %v471
        %v648 = vunpack.c.l.b16 %v472
        %v649 = vunpack.c.l.b16 %v473
        %v650 = vunpack.c.l.b16 %v474
        %v651 = vpack.c.b16 %v648, %v647
        %v652 = vpack.c.b16 %v650, %v649
        %vm655 = vcmask 261120
        %v657 = vsel %vm655, %v632, 0
        %v660 = vsel %vm655, %v633, 0
        %v663 = vsel %vm655, %v634, 0
        %v666 = vsel %vm655, %v635, 0
        %v669 = vsel %vm655, %v636, 0
        %v672 = vsel %vm655, %v637, 0
        %v675 = vsel %vm655, %v638, 0
        %v678 = vsel %vm655, %v639, 0
        %680 = vmatpush.bf16.msra.mxu0 0
        %681 = vmatpush.bf16.msra.mxu0 0
        %682 = vmatpush.bf16.msra.mxu0 0
        %683 = vmatpush.bf16.msra.mxu0 0
        %684 = vmatpush.bf16.msra.mxu0 0
        %685 = vmatpush.bf16.msra.mxu0 0
        %686 = vmatpush.bf16.msra.mxu0 %v652
        %687 = vmatpush.bf16.msra.mxu0 %v651
        %688 = vmatmul.bf16.gmra.mxu0 %v657
        %v689 = vpop.f32.mrf.mxu0
        %v690 = vadd.f32 %v641, %v689
        %v691 = vpop.f32.mrf.mxu0
        %v692 = vadd.f32 %v641, %v691
        %693 = vmatmul.bf16.gmra.mxu0 %v660
        %v694 = vpop.f32.mrf.mxu0
        %v695 = vadd.f32 %v641, %v694
        %v696 = vpop.f32.mrf.mxu0
        %v697 = vadd.f32 %v641, %v696
        %698 = vmatmul.bf16.gmra.mxu0 %v663
        %v699 = vpop.f32.mrf.mxu0
        %v700 = vadd.f32 %v641, %v699
        %v701 = vpop.f32.mrf.mxu0
        %v702 = vadd.f32 %v641, %v701
        %703 = vmatmul.bf16.gmra.mxu0 %v666
        %v704 = vpop.f32.mrf.mxu0
        %v705 = vadd.f32 %v641, %v704
        %v706 = vpop.f32.mrf.mxu0
        %v707 = vadd.f32 %v641, %v706
        %708 = vmatmul.bf16.gmra.mxu0 %v669
        %v709 = vpop.f32.mrf.mxu0
        %v710 = vadd.f32 %v641, %v709
        %v711 = vpop.f32.mrf.mxu0
        %v712 = vadd.f32 %v641, %v711
        %713 = vmatmul.bf16.gmra.mxu0 %v672
        %v714 = vpop.f32.mrf.mxu0
        %v715 = vadd.f32 %v641, %v714
        %v716 = vpop.f32.mrf.mxu0
        %v717 = vadd.f32 %v641, %v716
        %718 = vmatmul.bf16.gmra.mxu0 %v675
        %v719 = vpop.f32.mrf.mxu0
        %v720 = vadd.f32 %v641, %v719
        %v721 = vpop.f32.mrf.mxu0
        %v722 = vadd.f32 %v641, %v721
        %723 = vmatmul.bf16.gmra.mxu0 %v678
        %v724 = vpop.f32.mrf.mxu0
        %v725 = vadd.f32 %v641, %v724
        %v726 = vpop.f32.mrf.mxu0
        %v727 = vadd.f32 %v641, %v726
        %728 = vdwg.mxu0
        %729 = vst.msk [vmem:[%s416] sm:$0xff] %vm517, %v690
        %730 = vst.msk [vmem:[%s416 + $0x8] sm:$0xff] %vm517, %v692
        %731 = vst.msk [vmem:[%s416 + $0x10] sm:$0xff] %vm517, %v695
        %732 = vst.msk [vmem:[%s416 + $0x18] sm:$0xff] %vm517, %v697
        %733 = vst.msk [vmem:[%s416 + $0x20] sm:$0xff] %vm517, %v700
        %734 = vst.msk [vmem:[%s416 + $0x28] sm:$0xff] %vm517, %v702
        %735 = vst.msk [vmem:[%s416 + $0x30] sm:$0xff] %vm517, %v705
        %736 = vst.msk [vmem:[%s416 + $0x38] sm:$0xff] %vm517, %v707
        %737 = vst.msk [vmem:[%s416 + $0x40] sm:$0xff] %vm517, %v710
        %738 = vst.msk [vmem:[%s416 + $0x48] sm:$0xff] %vm517, %v712
        %739 = vst.msk [vmem:[%s416 + $0x50] sm:$0xff] %vm517, %v715
        %740 = vst.msk [vmem:[%s416 + $0x58] sm:$0xff] %vm517, %v717
        %741 = vst.msk [vmem:[%s416 + $0x60] sm:$0xff] %vm517, %v720
        %742 = vst.msk [vmem:[%s416 + $0x68] sm:$0xff] %vm517, %v722
        %743 = vst.msk [vmem:[%s416 + $0x70] sm:$0xff] %vm517, %v725
        %744 = vst.msk [vmem:[%s416 + $0x78] sm:$0xff] %vm517, %v727
        %v761 = vunpack.c.l.b16 %v437
        %v762 = vunpack.c.l.b16 %v438
        %v763 = vunpack.c.l.b16 %v439
        %v764 = vunpack.c.l.b16 %v440
        %v765 = vunpack.c.l.b16 %v441
        %v766 = vunpack.c.l.b16 %v442
        %v767 = vunpack.c.l.b16 %v443
        %v768 = vunpack.c.l.b16 %v444
        %v769 = vunpack.c.l.b16 %v445
        %v770 = vunpack.c.l.b16 %v446
        %v771 = vunpack.c.l.b16 %v447
        %v772 = vunpack.c.l.b16 %v448
        %v773 = vunpack.c.l.b16 %v449
        %v774 = vunpack.c.l.b16 %v450
        %v775 = vunpack.c.l.b16 %v451
        %v776 = vunpack.c.l.b16 %v452
        %v777 = vpack.c.b16 %v762, %v761
        %v778 = vpack.c.b16 %v764, %v763
        %v779 = vpack.c.b16 %v766, %v765
        %v780 = vpack.c.b16 %v768, %v767
        %v781 = vpack.c.b16 %v770, %v769
        %v782 = vpack.c.b16 %v772, %v771
        %v783 = vpack.c.b16 %v774, %v773
        %v784 = vpack.c.b16 %v776, %v775
        %v786 = vsel %vm517, %v777, 0
        %v789 = vsel %vm517, %v778, 0
        %v792 = vsel %vm517, %v779, 0
        %v795 = vsel %vm517, %v780, 0
        %v798 = vsel %vm517, %v781, 0
        %v801 = vsel %vm517, %v782, 0
        %v804 = vsel %vm517, %v783, 0
        %v807 = vsel %vm517, %v784, 0
        %v810 = vsel %vm542, %v475, 0
        %812 = vmatpush.bf16.msra.mxu0 0
        %813 = vmatpush.bf16.msra.mxu0 0
        %814 = vmatpush.bf16.msra.mxu0 0
        %815 = vmatpush.bf16.msra.mxu0 0
        %816 = vmatpush.bf16.msra.mxu0 0
        %817 = vmatpush.bf16.msra.mxu0 0
        %818 = vmatpush.bf16.msra.mxu0 0
        %819 = vmatpush.bf16.msra.mxu0 %v810
        %820 = vmatmul.bf16.gmra.mxu0 %v786
        %v821 = vpop.f32.mrf.mxu0
        %v822 = vadd.f32 0.0, %v821
        %v823 = vpop.f32.mrf.mxu0
        %v824 = vadd.f32 0.0, %v823
        %825 = vmatmul.bf16.gmra.mxu0 %v789
        %v826 = vpop.f32.mrf.mxu0
        %v827 = vadd.f32 0.0, %v826
        %v828 = vpop.f32.mrf.mxu0
        %v829 = vadd.f32 0.0, %v828
        %830 = vmatmul.bf16.gmra.mxu0 %v792
        %v831 = vpop.f32.mrf.mxu0
        %v832 = vadd.f32 0.0, %v831
        %v833 = vpop.f32.mrf.mxu0
        %v834 = vadd.f32 0.0, %v833
        %835 = vmatmul.bf16.gmra.mxu0 %v795
        %v836 = vpop.f32.mrf.mxu0
        %v837 = vadd.f32 0.0, %v836
        %v838 = vpop.f32.mrf.mxu0
        %v839 = vadd.f32 0.0, %v838
        %840 = vmatmul.bf16.gmra.mxu0 %v798
        %v841 = vpop.f32.mrf.mxu0
        %v842 = vadd.f32 0.0, %v841
        %v843 = vpop.f32.mrf.mxu0
        %v844 = vadd.f32 0.0, %v843
        %845 = vmatmul.bf16.gmra.mxu0 %v801
        %v846 = vpop.f32.mrf.mxu0
        %v847 = vadd.f32 0.0, %v846
        %v848 = vpop.f32.mrf.mxu0
        %v849 = vadd.f32 0.0, %v848
        %850 = vmatmul.bf16.gmra.mxu0 %v804
        %v851 = vpop.f32.mrf.mxu0
        %v852 = vadd.f32 0.0, %v851
        %v853 = vpop.f32.mrf.mxu0
        %v854 = vadd.f32 0.0, %v853
        %855 = vmatmul.bf16.gmra.mxu0 %v807
        %v856 = vpop.f32.mrf.mxu0
        %v857 = vadd.f32 0.0, %v856
        %v858 = vpop.f32.mrf.mxu0
        %v859 = vadd.f32 0.0, %v858
        %860 = vdwg.mxu0
        %v861 = vmul.f32 %v616, %v616
        %v862 = vmul.f32 %v617, %v617
        %v863 = vmul.f32 %v618, %v618
        %v864 = vmul.f32 %v619, %v619
        %v865 = vmul.f32 %v620, %v620
        %v866 = vmul.f32 %v621, %v621
        %v867 = vmul.f32 %v622, %v622
        %v868 = vmul.f32 %v623, %v623
        %v869 = vmul.f32 %v624, %v624
        %v870 = vmul.f32 %v625, %v625
        %v871 = vmul.f32 %v626, %v626
        %v872 = vmul.f32 %v627, %v627
        %v873 = vmul.f32 %v628, %v628
        %v874 = vmul.f32 %v629, %v629
        %v875 = vmul.f32 %v630, %v630
        %v876 = vmul.f32 %v631, %v631
        %v877 = vsub.f32 1.0, %v861
        %v878 = vsub.f32 1.0, %v862
        %v879 = vsub.f32 1.0, %v863
        %v880 = vsub.f32 1.0, %v864
        %v881 = vsub.f32 1.0, %v865
        %v882 = vsub.f32 1.0, %v866
        %v883 = vsub.f32 1.0, %v867
        %v884 = vsub.f32 1.0, %v868
        %v885 = vsub.f32 1.0, %v869
        %v886 = vsub.f32 1.0, %v870
        %v887 = vsub.f32 1.0, %v871
        %v888 = vsub.f32 1.0, %v872
        %v889 = vsub.f32 1.0, %v873
        %v890 = vsub.f32 1.0, %v874
        %v891 = vsub.f32 1.0, %v875
        %v892 = vsub.f32 1.0, %v876
        %v893 = vmul.f32 %v822, %v877
        %v894 = vmul.f32 %v824, %v878
        %v895 = vmul.f32 %v827, %v879
        %v896 = vmul.f32 %v829, %v880
        %v897 = vmul.f32 %v832, %v881
        %v898 = vmul.f32 %v834, %v882
        %v899 = vmul.f32 %v837, %v883
        %v900 = vmul.f32 %v839, %v884
        %v901 = vmul.f32 %v842, %v885
        %v902 = vmul.f32 %v844, %v886
        %v903 = vmul.f32 %v847, %v887
        %v904 = vmul.f32 %v849, %v888
        %v905 = vmul.f32 %v852, %v889
        %v906 = vmul.f32 %v854, %v890
        %v907 = vmul.f32 %v857, %v891
        %v908 = vmul.f32 %v859, %v892
        %909 = vmatpush.bf16.msra.mxu0 0
        %910 = vmatpush.bf16.msra.mxu0 0
        %911 = vmatpush.bf16.msra.mxu0 0
        %912 = vmatpush.bf16.msra.mxu0 0
        %913 = vmatpush.bf16.msra.mxu0 0
        %914 = vmatpush.bf16.msra.mxu0 0
        %915 = vmatpush.bf16.msra.mxu0 0
        %916 = vmatpush.bf16.msra.mxu0 %v544
        %917 = vmatmul.bf16.gmra.mxu0 %v786
        %v918 = vpop.f32.mrf.mxu0
        %v919 = vadd.f32 0.0, %v918
        %v920 = vpop.f32.mrf.mxu0
        %v921 = vadd.f32 0.0, %v920
        %922 = vmatmul.bf16.gmra.mxu0 %v789
        %v923 = vpop.f32.mrf.mxu0
        %v924 = vadd.f32 0.0, %v923
        %v925 = vpop.f32.mrf.mxu0
        %v926 = vadd.f32 0.0, %v925
        %927 = vmatmul.bf16.gmra.mxu0 %v792
        %v928 = vpop.f32.mrf.mxu0
        %v929 = vadd.f32 0.0, %v928
        %v930 = vpop.f32.mrf.mxu0
        %v931 = vadd.f32 0.0, %v930
        %932 = vmatmul.bf16.gmra.mxu0 %v795
        %v933 = vpop.f32.mrf.mxu0
        %v934 = vadd.f32 0.0, %v933
        %v935 = vpop.f32.mrf.mxu0
        %v936 = vadd.f32 0.0, %v935
        %937 = vmatmul.bf16.gmra.mxu0 %v798
        %v938 = vpop.f32.mrf.mxu0
        %v939 = vadd.f32 0.0, %v938
        %v940 = vpop.f32.mrf.mxu0
        %v941 = vadd.f32 0.0, %v940
        %942 = vmatmul.bf16.gmra.mxu0 %v801
        %v943 = vpop.f32.mrf.mxu0
        %v944 = vadd.f32 0.0, %v943
        %v945 = vpop.f32.mrf.mxu0
        %v946 = vadd.f32 0.0, %v945
        %947 = vmatmul.bf16.gmra.mxu0 %v804
        %v948 = vpop.f32.mrf.mxu0
        %v949 = vadd.f32 0.0, %v948
        %v950 = vpop.f32.mrf.mxu0
        %v951 = vadd.f32 0.0, %v950
        %952 = vmatmul.bf16.gmra.mxu0 %v807
        %v953 = vpop.f32.mrf.mxu0
        %v954 = vadd.f32 0.0, %v953
        %v955 = vpop.f32.mrf.mxu0
        %v956 = vadd.f32 0.0, %v955
        %957 = vdwg.mxu0
        %v958 = vmul.f32 %v893, %v919
        %v959 = vmul.f32 %v894, %v921
        %v960 = vmul.f32 %v895, %v924
        %v961 = vmul.f32 %v896, %v926
        %v962 = vmul.f32 %v897, %v929
        %v963 = vmul.f32 %v898, %v931
        %v964 = vmul.f32 %v899, %v934
        %v965 = vmul.f32 %v900, %v936
        %v966 = vmul.f32 %v901, %v939
        %v967 = vmul.f32 %v902, %v941
        %v968 = vmul.f32 %v903, %v944
        %v969 = vmul.f32 %v904, %v946
        %v970 = vmul.f32 %v905, %v949
        %v971 = vmul.f32 %v906, %v951
        %v972 = vmul.f32 %v907, %v954
        %v973 = vmul.f32 %v908, %v956
        %v974 = vpack.c.bf16 %v959, %v958
        %v975 = vpack.c.bf16 %v961, %v960
        %v976 = vpack.c.bf16 %v963, %v962
        %v977 = vpack.c.bf16 %v965, %v964
        %v978 = vpack.c.bf16 %v967, %v966
        %v979 = vpack.c.bf16 %v969, %v968
        %v980 = vpack.c.bf16 %v971, %v970
        %v981 = vpack.c.bf16 %v973, %v972
        %v983 = vsel %vm655, 1065369472, 0
        %v986 = vsel %vm655, %v974, 0
        %v989 = vsel %vm655, %v975, 0
        %v992 = vsel %vm655, %v976, 0
        %v995 = vsel %vm655, %v977, 0
        %v998 = vsel %vm655, %v978, 0
        %v1001 = vsel %vm655, %v979, 0
        %v1004 = vsel %vm655, %v980, 0
        %v1007 = vsel %vm655, %v981, 0
        %1009 = vmatpush.bf16.xpose.msra.mxu0 %v1007
        %1010 = vmatpush.bf16.xpose.msra.mxu0 %v1004
        %1011 = vmatpush.bf16.xpose.msra.mxu0 %v1001
        %1012 = vmatpush.bf16.xpose.msra.mxu0 %v998
        %1013 = vmatpush.bf16.xpose.msra.mxu0 %v995
        %1014 = vmatpush.bf16.xpose.msra.mxu0 %v992
        %1015 = vmatpush.bf16.xpose.msra.mxu0 %v989
        %1016 = vmatpush.bf16.xpose.msra.mxu0 %v986
        %1017 = vmatmul.bf16.gmra.mxu0 %v983
        %v1018 = vpop.f32.mrf.mxu0
        %v1019 = vadd.f32 0.0, %v1018
        %v1020 = vpop.f32.mrf.mxu0
        %1021 = vdwg.mxu0
        %v1022 = vsub.f32 0.0, %v1019
        %1023 = vst [vmem:[%s393] sm:$0x1] %v1022
        %s1024 = smul.u32 16, %s26
        %p1025 = scmp.lt.s32.totalorder %s1024, 63
        %s1026 = scalar_select %p1025, %s1024, 63
        %s1027 = smul.addr %s1026, 8
        %s1028 = scalar_lea.vmem %s9, %s1027
        %s1029 = sand.u32 %s264, 1
        %s1030 = scalar_lea.sflag [#allocation4], %s1029
        %s1031 = sand.u32 %s264, 1
        %s1032 = scalar_lea.vmem [#allocation3], %s1031
        // Predicated region
        $region57: #{tpu_custom_call.1} parent=55 // pred_check
          %p1033 = pneg %p248
        $region58: #{tpu_custom_call.1} parent=55 // pred_check_branch
          %1035 = sbr.rel (%p1033) target = $region60
        $region59: #{tpu_custom_call.1} parent=55 // pred_region
          %s1036 = smul.u32 16, %s26
        $region60: #{tpu_custom_call.1} parent=55 // pred_fallthru
          _
        // Predicated region
        $region61: #{tpu_custom_call.1} parent=55 // pred_check
          %p1037 = pneg %p274
        $region62: #{tpu_custom_call.1} parent=55 // pred_check_branch
          %1039 = sbr.rel (%p1037) target = $region64
        $region63: #{tpu_custom_call.1} parent=55 // pred_region
          %1041 = vsyncadd %s1030, 0
          %s1042 = scalar_lea.hbm %s10, %s26
          %s1044 = sshll.u32 %s1032, 4
          %s1045 = int_to_ptr.vmem [resolvable:$true] %s1044
          %s1046 = sshll.u32 %s1042, 4
          %s1047 = int_to_ptr.hbm [resolvable:$true] %s1046
          %1049 = dma.vmem_to_hbm [thread:$0]  %s1045, 16, %s1047, %s1030
        $region64: #{tpu_custom_call.1} parent=55 // pred_fallthru
          _
      $region56: #{tpu_custom_call.1} parent=5 // pred_fallthru
        _
      %p1050 = scmp.le.s32.totalorder 2, %s21
      // Predicated region
      $region65: #{tpu_custom_call.1} parent=5 // pred_check
        %p1051 = pneg %p1050
      $region66: #{tpu_custom_call.1} parent=5 // pred_check_branch
        %1053 = sbr.rel (%p1051) target = $region68
      $region67: #{tpu_custom_call.1} parent=5 // pred_region
        %s1054 = ssub.s32 %s21, 2
        // Predicated region
        $region69: #{tpu_custom_call.1} parent=67 // pred_check
          %p1055 = pneg %p254
        $region70: #{tpu_custom_call.1} parent=67 // pred_check_branch
          %1057 = sbr.rel (%p1055) target = $region72
        $region71: #{tpu_custom_call.1} parent=67 // pred_region
          %s1058 = smul.u32 16, %s27
          %p1059 = scmp.lt.s32.totalorder %s1058, 63
          %s1060 = scalar_select %p1059, %s1058, 63
          %s1061 = smul.addr %s1060, 8
          %s1062 = scalar_lea.vmem %s9, %s1061
        $region72: #{tpu_custom_call.1} parent=67 // pred_fallthru
          _
        // Predicated region
        $region73: #{tpu_custom_call.1} parent=67 // pred_check
          %p1063 = pneg %p280
        $region74: #{tpu_custom_call.1} parent=67 // pred_check_branch
          %1065 = sbr.rel (%p1063) target = $region76
        $region75: #{tpu_custom_call.1} parent=67 // pred_region
          %s1066 = sand.u32 %s265, 1
          %s1067 = scalar_lea.sflag [#allocation4], %s1066
          %s1068 = sand.u32 %s265, 1
          %s1069 = scalar_lea.vmem [#allocation3], %s1068
          %1071 = dma.done %s1067, 16
        $region76: #{tpu_custom_call.1} parent=67 // pred_fallthru
          _
      $region68: #{tpu_custom_call.1} parent=5 // pred_fallthru
        _
    $region6: #{tpu_custom_call.1} parent=1 // loop_footer
      %s25 = sadd.s32 1, %s21
    $region7: #{tpu_custom_call.1} parent=1 // loop_footer_branch
      %20 = sbr.rel target = $region3
    $region8: #{tpu_custom_call.1} parent=1 // loop_exit
      _
    %1072 = vsyncpa [#allocation4], 1
    %s1073 = scalar_lea.sflag [#allocation4], 1
    %1074 = vsyncpa %s1073, 1

</llo_original>
